<compile_context>
chip_gen: v5e
topology: v5e:2x2
jax: 0.10.0
libtpu: 0.0.40
codegen_flags: <defaults>
</compile_context>

<pallas_src>
import functools

import jax
import jax.numpy as jnp
from jax import lax
from jax.experimental import pallas as pl
from jax.experimental.pallas import tpu as pltpu

_LANES = 128


def _round_up(x, m):
    return ((x + m - 1) // m) * m


def _recall_kernel(pred_ref, gt_ref, out_ref, tp_acc, gs_acc, *, num_classes, smooth):
    # pred_ref: (1, C, S_TILE, 128) f32
    # gt_ref:   (1, 1, S_TILE, 128) i32
    # out_ref:  (1, 1, C)           f32  (written only on the last spatial step)
    # tp_acc / gs_acc: (C, 8, 128)  f32  VMEM accumulators (persist across grid)
    s = pl.program_id(1)

    @pl.when(s == 0)
    def _init():
        tp_acc[...] = jnp.zeros_like(tp_acc)
        gs_acc[...] = jnp.zeros_like(gs_acc)

    s_tile = pred_ref.shape[2]
    n_chunks = s_tile // 8

    def chunk_body(i, carry):
        base = pl.multiple_of(i * 8, 8)
        gt_blk = gt_ref[0, 0, pl.ds(base, 8), :]               # (8,128) i32

        # running argmax over the class axis (first-occurrence tie break)
        best_val = pred_ref[0, 0, pl.ds(base, 8), :]           # (8,128) f32
        best_idx = jnp.zeros((8, _LANES), dtype=jnp.int32)
        for c in range(1, num_classes):
            cur = pred_ref[0, c, pl.ds(base, 8), :]
            better = cur > best_val
            best_idx = jnp.where(better, jnp.int32(c), best_idx)
            best_val = jnp.where(better, cur, best_val)

        # shared predicted==gt mask, hoisted out of the class loop
        match = best_idx == gt_blk                              # (8,128) bool

        # element-wise (VPU) accumulation; no cross-lane reduce on the hot path
        for c in range(num_classes):
            gt_c = gt_blk == c
            tp_acc[c] = tp_acc[c] + (gt_c & match).astype(jnp.float32)
            gs_acc[c] = gs_acc[c] + gt_c.astype(jnp.float32)
        return carry

    lax.fori_loop(0, n_chunks, chunk_body, 0)

    @pl.when(s == pl.num_programs(1) - 1)
    def _finalize():
        recalls = []
        for c in range(num_classes):
            tp = jnp.sum(jnp.sum(tp_acc[c], axis=1, keepdims=True),
                         axis=0, keepdims=True)                 # (1,1)
            gs = jnp.sum(jnp.sum(gs_acc[c], axis=1, keepdims=True),
                         axis=0, keepdims=True)                 # (1,1) == TP + FN
            # exact divide (do NOT use approx reciprocal: smooth = 1e-9)
            recalls.append((tp + smooth) / (gs + smooth))
        out_ref[0] = jnp.concatenate(recalls, axis=1)           # (1, C)


def recall_score(prediction, ground_truth, smooth=1e-9):
    """prediction: (B, C, H, W) float; ground_truth: (B, H, W) int. Returns scalar."""
    B, C, H, W = prediction.shape
    HW = H * W
    s_raw = -(-HW // _LANES)                       # rows of 128 lanes

    # ~2 MB prediction tile per grid step (multiple of 8 sublane rows);
    # keeps double-buffered VMEM use ~5 MB -> safe on v5e/v6e and v7x (64 MiB).
    s_tile = (2 * 1024 * 1024) // (C * _LANES * 4)
    s_tile = max(8, min(1024, (s_tile // 8) * 8))
    if s_raw <= s_tile:
        s_tile = _round_up(s_raw, 8)
    s_total = _round_up(s_raw, s_tile)
    hw_pad = s_total * _LANES

    pred = prediction.astype(jnp.float32).reshape(B, C, HW)
    gt = ground_truth.astype(jnp.int32).reshape(B, HW)
    if hw_pad != HW:
        pred = jnp.pad(pred, ((0, 0), (0, 0), (0, hw_pad - HW)))
        # padded pixels get the out-of-range label C -> excluded from TP and TP+FN
        gt = jnp.pad(gt, ((0, 0), (0, hw_pad - HW)), constant_values=C)
    pred = pred.reshape(B, C, s_total, _LANES)
    gt = gt.reshape(B, 1, s_total, _LANES)

    per_bc = pl.pallas_call(
        functools.partial(_recall_kernel, num_classes=C, smooth=smooth),
        out_shape=jax.ShapeDtypeStruct((B, 1, C), jnp.float32),
        grid=(B, s_total // s_tile),
        in_specs=[
            pl.BlockSpec((1, C, s_tile, _LANES), lambda b, s: (b, 0, s, 0)),
            pl.BlockSpec((1, 1, s_tile, _LANES), lambda b, s: (b, 0, s, 0)),
        ],
        out_specs=pl.BlockSpec((1, 1, C), lambda b, s: (b, 0, 0)),
        scratch_shapes=[
            pltpu.VMEM((C, 8, _LANES), jnp.float32),   # TP accumulators
            pltpu.VMEM((C, 8, _LANES), jnp.float32),   # GT-count (TP+FN) accumulators
        ],
        compiler_params=pltpu.CompilerParams(
            dimension_semantics=("parallel", "arbitrary")),
    )(pred, gt)

    # Final tiny mean over (B, C) recall values (glue, matches torch.mean(...).item()).
    return jnp.mean(per_bc)


def _reference(prediction, ground_truth, smooth=1e-9):
    # Pure-JAX reference for correctness checking.
    C = prediction.shape[1]
    pred_oh = jax.nn.one_hot(jnp.argmax(prediction, axis=1), C, axis=1)
    gt_oh = jax.nn.one_hot(ground_truth, C, axis=1)
    tp = jnp.sum(gt_oh * pred_oh, axis=(2, 3))
    fn = jnp.sum(gt_oh, axis=(2, 3)) - tp
    return jnp.mean((tp + smooth) / (tp + fn + smooth))


if __name__ == "__main__":
    key = jax.random.PRNGKey(0)
    k1, k2 = jax.random.split(key)
    B, C, H, W = 2, 4, 16, 16
    prediction = jax.random.normal(k1, (B, C, H, W), dtype=jnp.float32)
    ground_truth = jax.random.randint(k2, (B, H, W), 0, C, dtype=jnp.int32)

    result = recall_score(prediction, ground_truth)
    result = jax.block_until_ready(result)

    ref = _reference(prediction, ground_truth)
    assert abs(float(result) - float(ref)) < 1e-5, (float(result), float(ref))

    print("KERNEL_OK")
</pallas_src>

<mosaic_0001>
module attributes {stable_mosaic.version = 11 : i64} {
  func.func @_recall_kernel(%arg0: i32, %arg1: i32, %arg2: memref<1x4x8x128xf32, #tpu.memory_space<vmem>>, %arg3: memref<1x1x8x128xi32, #tpu.memory_space<vmem>>, %arg4: memref<1x1x4xf32, #tpu.memory_space<vmem>>, %arg5: memref<4x8x128xf32, #tpu.memory_space<vmem>>, %arg6: memref<4x8x128xf32, #tpu.memory_space<vmem>>) attributes {dimension_semantics = [#tpu.dimension_semantics<parallel>, #tpu.dimension_semantics<arbitrary>], iteration_bounds = array<i64: 2, 1>, scalar_prefetch = 0 : i64, scratch_operands = 2 : i64, tpu.core_type = #tpu.core_type<tc>, window_params = [{transform_indices = @transform_0, window_bounds = array<i64: 1, 4, 8, 128>}, {transform_indices = @transform_1, window_bounds = array<i64: 1, 1, 8, 128>}, {transform_indices = @transform_2, window_bounds = array<i64: 1, 1, 4>}]} {
    %c0_i32 = arith.constant 0 : i32
    %0 = arith.cmpi eq, %arg1, %c0_i32 : i32
    %1 = arith.extui %0 : i1 to i32
    %c0_i32_0 = arith.constant 0 : i32
    %2 = arith.cmpi ne, %1, %c0_i32_0 : i32
    scf.if %2 {
      %cst = arith.constant 0.000000e+00 : f32
      %112 = vector.broadcast %cst : f32 to vector<4x8x128xf32>
      %c0_69 = arith.constant 0 : index
      %c0_70 = arith.constant 0 : index
      %c0_71 = arith.constant 0 : index
      %113 = vector.load %arg5[%c0_69, %c0_70, %c0_71] : memref<4x8x128xf32, #tpu.memory_space<vmem>>, vector<4x8x128xf32>
      tpu.vector_store %arg5[%c0_69, %c0_70, %c0_71], %112 {strides = array<i32>} : memref<4x8x128xf32, #tpu.memory_space<vmem>>, vector<4x8x128xf32>,
      %cst_72 = arith.constant 0.000000e+00 : f32
      %114 = vector.broadcast %cst_72 : f32 to vector<4x8x128xf32>
      %c0_73 = arith.constant 0 : index
      %c0_74 = arith.constant 0 : index
      %c0_75 = arith.constant 0 : index
      %115 = vector.load %arg6[%c0_73, %c0_74, %c0_75] : memref<4x8x128xf32, #tpu.memory_space<vmem>>, vector<4x8x128xf32>
      tpu.vector_store %arg6[%c0_73, %c0_74, %c0_75], %114 {strides = array<i32>} : memref<4x8x128xf32, #tpu.memory_space<vmem>>, vector<4x8x128xf32>,
    } else {
    }
    %c0_i32_1 = arith.constant 0 : i32
    %c8_i32 = arith.constant 8 : i32
    %3 = arith.muli %c0_i32_1, %c8_i32 : i32
    %4 = tpu.assume_multiple %3, 8 : i32
    %c0 = arith.constant 0 : index
    %c0_2 = arith.constant 0 : index
    %5 = arith.index_cast %4 : i32 to index
    %c0_3 = arith.constant 0 : index
    %6 = vector.load %arg3[%c0, %c0_2, %5, %c0_3] : memref<1x1x8x128xi32, #tpu.memory_space<vmem>>, vector<1x1x8x128xi32>
    %7 = vector.shape_cast %6 : vector<1x1x8x128xi32> to vector<8x128xi32>
    %c0_4 = arith.constant 0 : index
    %c0_5 = arith.constant 0 : index
    %8 = arith.index_cast %4 : i32 to index
    %c0_6 = arith.constant 0 : index
    %9 = vector.load %arg2[%c0_4, %c0_5, %8, %c0_6] : memref<1x4x8x128xf32, #tpu.memory_space<vmem>>, vector<1x1x8x128xf32>
    %10 = vector.shape_cast %9 : vector<1x1x8x128xf32> to vector<8x128xf32>
    %c0_i32_7 = arith.constant 0 : i32
    %11 = vector.broadcast %c0_i32_7 : i32 to vector<8x128xi32>
    %c0_8 = arith.constant 0 : index
    %c1 = arith.constant 1 : index
    %12 = arith.index_cast %4 : i32 to index
    %c0_9 = arith.constant 0 : index
    %13 = vector.load %arg2[%c0_8, %c1, %12, %c0_9] : memref<1x4x8x128xf32, #tpu.memory_space<vmem>>, vector<1x1x8x128xf32>
    %14 = vector.shape_cast %13 : vector<1x1x8x128xf32> to vector<8x128xf32>
    %15 = arith.cmpf ogt, %14, %10 : vector<8x128xf32>
    %c1_i32 = arith.constant 1 : i32
    %16 = vector.broadcast %c1_i32 : i32 to vector<8x128xi32>
    %17 = arith.select %15, %16, %11 : vector<8x128xi1>, vector<8x128xi32>
    %18 = arith.select %15, %14, %10 : vector<8x128xi1>, vector<8x128xf32>
    %c0_10 = arith.constant 0 : index
    %c2 = arith.constant 2 : index
    %19 = arith.index_cast %4 : i32 to index
    %c0_11 = arith.constant 0 : index
    %20 = vector.load %arg2[%c0_10, %c2, %19, %c0_11] : memref<1x4x8x128xf32, #tpu.memory_space<vmem>>, vector<1x1x8x128xf32>
    %21 = vector.shape_cast %20 : vector<1x1x8x128xf32> to vector<8x128xf32>
    %22 = arith.cmpf ogt, %21, %18 : vector<8x128xf32>
    %c2_i32 = arith.constant 2 : i32
    %23 = vector.broadcast %c2_i32 : i32 to vector<8x128xi32>
    %24 = arith.select %22, %23, %17 : vector<8x128xi1>, vector<8x128xi32>
    %25 = arith.select %22, %21, %18 : vector<8x128xi1>, vector<8x128xf32>
    %c0_12 = arith.constant 0 : index
    %c3 = arith.constant 3 : index
    %26 = arith.index_cast %4 : i32 to index
    %c0_13 = arith.constant 0 : index
    %27 = vector.load %arg2[%c0_12, %c3, %26, %c0_13] : memref<1x4x8x128xf32, #tpu.memory_space<vmem>>, vector<1x1x8x128xf32>
    %28 = vector.shape_cast %27 : vector<1x1x8x128xf32> to vector<8x128xf32>
    %29 = arith.cmpf ogt, %28, %25 : vector<8x128xf32>
    %c3_i32 = arith.constant 3 : i32
    %30 = vector.broadcast %c3_i32 : i32 to vector<8x128xi32>
    %31 = arith.select %29, %30, %24 : vector<8x128xi1>, vector<8x128xi32>
    %32 = arith.cmpi eq, %31, %7 : vector<8x128xi32>
    %c0_i32_14 = arith.constant 0 : i32
    %33 = vector.broadcast %c0_i32_14 : i32 to vector<8x128xi32>
    %34 = arith.cmpi eq, %7, %33 : vector<8x128xi32>
    %c0_15 = arith.constant 0 : index
    %c0_16 = arith.constant 0 : index
    %c0_17 = arith.constant 0 : index
    %35 = vector.load %arg5[%c0_15, %c0_16, %c0_17] : memref<4x8x128xf32, #tpu.memory_space<vmem>>, vector<1x8x128xf32>
    %36 = vector.shape_cast %35 : vector<1x8x128xf32> to vector<8x128xf32>
    %37 = arith.andi %34, %32 : vector<8x128xi1>
    %38 = arith.extui %37 : vector<8x128xi1> to vector<8x128xi32>
    %39 = arith.sitofp %38 : vector<8x128xi32> to vector<8x128xf32>
    %40 = arith.addf %36, %39 : vector<8x128xf32>
    %c0_18 = arith.constant 0 : index
    %c0_19 = arith.constant 0 : index
    %c0_20 = arith.constant 0 : index
    %41 = vector.load %arg5[%c0_18, %c0_19, %c0_20] : memref<4x8x128xf32, #tpu.memory_space<vmem>>, vector<1x8x128xf32>
    %42 = vector.shape_cast %41 : vector<1x8x128xf32> to vector<8x128xf32>
    %43 = vector.shape_cast %40 : vector<8x128xf32> to vector<1x8x128xf32>
    tpu.vector_store %arg5[%c0_18, %c0_19, %c0_20], %43 {strides = array<i32>} : memref<4x8x128xf32, #tpu.memory_space<vmem>>, vector<1x8x128xf32>,
    %c0_21 = arith.constant 0 : index
    %c0_22 = arith.constant 0 : index
    %c0_23 = arith.constant 0 : index
    %44 = vector.load %arg6[%c0_21, %c0_22, %c0_23] : memref<4x8x128xf32, #tpu.memory_space<vmem>>, vector<1x8x128xf32>
    %45 = vector.shape_cast %44 : vector<1x8x128xf32> to vector<8x128xf32>
    %46 = arith.extui %34 : vector<8x128xi1> to vector<8x128xi32>
    %47 = arith.sitofp %46 : vector<8x128xi32> to vector<8x128xf32>
    %48 = arith.addf %45, %47 : vector<8x128xf32>
    %c0_24 = arith.constant 0 : index
    %c0_25 = arith.constant 0 : index
    %c0_26 = arith.constant 0 : index
    %49 = vector.load %arg6[%c0_24, %c0_25, %c0_26] : memref<4x8x128xf32, #tpu.memory_space<vmem>>, vector<1x8x128xf32>
    %50 = vector.shape_cast %49 : vector<1x8x128xf32> to vector<8x128xf32>
    %51 = vector.shape_cast %48 : vector<8x128xf32> to vector<1x8x128xf32>
    tpu.vector_store %arg6[%c0_24, %c0_25, %c0_26], %51 {strides = array<i32>} : memref<4x8x128xf32, #tpu.memory_space<vmem>>, vector<1x8x128xf32>,
    %c1_i32_27 = arith.constant 1 : i32
    %52 = vector.broadcast %c1_i32_27 : i32 to vector<8x128xi32>
    %53 = arith.cmpi eq, %7, %52 : vector<8x128xi32>
    %c1_28 = arith.constant 1 : index
    %c0_29 = arith.constant 0 : index
    %c0_30 = arith.constant 0 : index
    %54 = vector.load %arg5[%c1_28, %c0_29, %c0_30] : memref<4x8x128xf32, #tpu.memory_space<vmem>>, vector<1x8x128xf32>
    %55 = vector.shape_cast %54 : vector<1x8x128xf32> to vector<8x128xf32>
    %56 = arith.andi %53, %32 : vector<8x128xi1>
    %57 = arith.extui %56 : vector<8x128xi1> to vector<8x128xi32>
    %58 = arith.sitofp %57 : vector<8x128xi32> to vector<8x128xf32>
    %59 = arith.addf %55, %58 : vector<8x128xf32>
    %c1_31 = arith.constant 1 : index
    %c0_32 = arith.constant 0 : index
    %c0_33 = arith.constant 0 : index
    %60 = vector.load %arg5[%c1_31, %c0_32, %c0_33] : memref<4x8x128xf32, #tpu.memory_space<vmem>>, vector<1x8x128xf32>
    %61 = vector.shape_cast %60 : vector<1x8x128xf32> to vector<8x128xf32>
    %62 = vector.shape_cast %59 : vector<8x128xf32> to vector<1x8x128xf32>
    tpu.vector_store %arg5[%c1_31, %c0_32, %c0_33], %62 {strides = array<i32>} : memref<4x8x128xf32, #tpu.memory_space<vmem>>, vector<1x8x128xf32>,
    %c1_34 = arith.constant 1 : index
    %c0_35 = arith.constant 0 : index
    %c0_36 = arith.constant 0 : index
    %63 = vector.load %arg6[%c1_34, %c0_35, %c0_36] : memref<4x8x128xf32, #tpu.memory_space<vmem>>, vector<1x8x128xf32>
    %64 = vector.shape_cast %63 : vector<1x8x128xf32> to vector<8x128xf32>
    %65 = arith.extui %53 : vector<8x128xi1> to vector<8x128xi32>
    %66 = arith.sitofp %65 : vector<8x128xi32> to vector<8x128xf32>
    %67 = arith.addf %64, %66 : vector<8x128xf32>
    %c1_37 = arith.constant 1 : index
    %c0_38 = arith.constant 0 : index
    %c0_39 = arith.constant 0 : index
    %68 = vector.load %arg6[%c1_37, %c0_38, %c0_39] : memref<4x8x128xf32, #tpu.memory_space<vmem>>, vector<1x8x128xf32>
    %69 = vector.shape_cast %68 : vector<1x8x128xf32> to vector<8x128xf32>
    %70 = vector.shape_cast %67 : vector<8x128xf32> to vector<1x8x128xf32>
    tpu.vector_store %arg6[%c1_37, %c0_38, %c0_39], %70 {strides = array<i32>} : memref<4x8x128xf32, #tpu.memory_space<vmem>>, vector<1x8x128xf32>,
    %c2_i32_40 = arith.constant 2 : i32
    %71 = vector.broadcast %c2_i32_40 : i32 to vector<8x128xi32>
    %72 = arith.cmpi eq, %7, %71 : vector<8x128xi32>
    %c2_41 = arith.constant 2 : index
    %c0_42 = arith.constant 0 : index
    %c0_43 = arith.constant 0 : index
    %73 = vector.load %arg5[%c2_41, %c0_42, %c0_43] : memref<4x8x128xf32, #tpu.memory_space<vmem>>, vector<1x8x128xf32>
    %74 = vector.shape_cast %73 : vector<1x8x128xf32> to vector<8x128xf32>
    %75 = arith.andi %72, %32 : vector<8x128xi1>
    %76 = arith.extui %75 : vector<8x128xi1> to vector<8x128xi32>
    %77 = arith.sitofp %76 : vector<8x128xi32> to vector<8x128xf32>
    %78 = arith.addf %74, %77 : vector<8x128xf32>
    %c2_44 = arith.constant 2 : index
    %c0_45 = arith.constant 0 : index
    %c0_46 = arith.constant 0 : index
    %79 = vector.load %arg5[%c2_44, %c0_45, %c0_46] : memref<4x8x128xf32, #tpu.memory_space<vmem>>, vector<1x8x128xf32>
    %80 = vector.shape_cast %79 : vector<1x8x128xf32> to vector<8x128xf32>
    %81 = vector.shape_cast %78 : vector<8x128xf32> to vector<1x8x128xf32>
    tpu.vector_store %arg5[%c2_44, %c0_45, %c0_46], %81 {strides = array<i32>} : memref<4x8x128xf32, #tpu.memory_space<vmem>>, vector<1x8x128xf32>,
    %c2_47 = arith.constant 2 : index
    %c0_48 = arith.constant 0 : index
    %c0_49 = arith.constant 0 : index
    %82 = vector.load %arg6[%c2_47, %c0_48, %c0_49] : memref<4x8x128xf32, #tpu.memory_space<vmem>>, vector<1x8x128xf32>
    %83 = vector.shape_cast %82 : vector<1x8x128xf32> to vector<8x128xf32>
    %84 = arith.extui %72 : vector<8x128xi1> to vector<8x128xi32>
    %85 = arith.sitofp %84 : vector<8x128xi32> to vector<8x128xf32>
    %86 = arith.addf %83, %85 : vector<8x128xf32>
    %c2_50 = arith.constant 2 : index
    %c0_51 = arith.constant 0 : index
    %c0_52 = arith.constant 0 : index
    %87 = vector.load %arg6[%c2_50, %c0_51, %c0_52] : memref<4x8x128xf32, #tpu.memory_space<vmem>>, vector<1x8x128xf32>
    %88 = vector.shape_cast %87 : vector<1x8x128xf32> to vector<8x128xf32>
    %89 = vector.shape_cast %86 : vector<8x128xf32> to vector<1x8x128xf32>
    tpu.vector_store %arg6[%c2_50, %c0_51, %c0_52], %89 {strides = array<i32>} : memref<4x8x128xf32, #tpu.memory_space<vmem>>, vector<1x8x128xf32>,
    %c3_i32_53 = arith.constant 3 : i32
    %90 = vector.broadcast %c3_i32_53 : i32 to vector<8x128xi32>
    %91 = arith.cmpi eq, %7, %90 : vector<8x128xi32>
    %c3_54 = arith.constant 3 : index
    %c0_55 = arith.constant 0 : index
    %c0_56 = arith.constant 0 : index
    %92 = vector.load %arg5[%c3_54, %c0_55, %c0_56] : memref<4x8x128xf32, #tpu.memory_space<vmem>>, vector<1x8x128xf32>
    %93 = vector.shape_cast %92 : vector<1x8x128xf32> to vector<8x128xf32>
    %94 = arith.andi %91, %32 : vector<8x128xi1>
    %95 = arith.extui %94 : vector<8x128xi1> to vector<8x128xi32>
    %96 = arith.sitofp %95 : vector<8x128xi32> to vector<8x128xf32>
    %97 = arith.addf %93, %96 : vector<8x128xf32>
    %c3_57 = arith.constant 3 : index
    %c0_58 = arith.constant 0 : index
    %c0_59 = arith.constant 0 : index
    %98 = vector.load %arg5[%c3_57, %c0_58, %c0_59] : memref<4x8x128xf32, #tpu.memory_space<vmem>>, vector<1x8x128xf32>
    %99 = vector.shape_cast %98 : vector<1x8x128xf32> to vector<8x128xf32>
    %100 = vector.shape_cast %97 : vector<8x128xf32> to vector<1x8x128xf32>
    tpu.vector_store %arg5[%c3_57, %c0_58, %c0_59], %100 {strides = array<i32>} : memref<4x8x128xf32, #tpu.memory_space<vmem>>, vector<1x8x128xf32>,
    %c3_60 = arith.constant 3 : index
    %c0_61 = arith.constant 0 : index
    %c0_62 = arith.constant 0 : index
    %101 = vector.load %arg6[%c3_60, %c0_61, %c0_62] : memref<4x8x128xf32, #tpu.memory_space<vmem>>, vector<1x8x128xf32>
    %102 = vector.shape_cast %101 : vector<1x8x128xf32> to vector<8x128xf32>
    %103 = arith.extui %91 : vector<8x128xi1> to vector<8x128xi32>
    %104 = arith.sitofp %103 : vector<8x128xi32> to vector<8x128xf32>
    %105 = arith.addf %102, %104 : vector<8x128xf32>
    %c3_63 = arith.constant 3 : index
    %c0_64 = arith.constant 0 : index
    %c0_65 = arith.constant 0 : index
    %106 = vector.load %arg6[%c3_63, %c0_64, %c0_65] : memref<4x8x128xf32, #tpu.memory_space<vmem>>, vector<1x8x128xf32>
    %107 = vector.shape_cast %106 : vector<1x8x128xf32> to vector<8x128xf32>
    %108 = vector.shape_cast %105 : vector<8x128xf32> to vector<1x8x128xf32>
    tpu.vector_store %arg6[%c3_63, %c0_64, %c0_65], %108 {strides = array<i32>} : memref<4x8x128xf32, #tpu.memory_space<vmem>>, vector<1x8x128xf32>,
    %c1_i32_66 = arith.constant 1 : i32
    %c0_i32_67 = arith.constant 0 : i32
    %109 = arith.cmpi eq, %arg1, %c0_i32_67 : i32
    %110 = arith.extui %109 : i1 to i32
    %c0_i32_68 = arith.constant 0 : i32
    %111 = arith.cmpi ne, %110, %c0_i32_68 : i32
    scf.if %111 {
      %c0_69 = arith.constant 0 : index
      %c0_70 = arith.constant 0 : index
      %c0_71 = arith.constant 0 : index
      %112 = vector.load %arg5[%c0_69, %c0_70, %c0_71] : memref<4x8x128xf32, #tpu.memory_space<vmem>>, vector<1x8x128xf32>
      %113 = vector.shape_cast %112 : vector<1x8x128xf32> to vector<8x128xf32>
      %cst = arith.constant dense<0.000000e+00> : vector<8xf32>
      %114 = vector.multi_reduction <add>, %113, %cst [1] : vector<8x128xf32> to vector<8xf32>
      %115 = vector.shape_cast %114 : vector<8xf32> to vector<8x1xf32>
      %cst_72 = arith.constant dense<0.000000e+00> : vector<1xf32>
      %116 = vector.multi_reduction <add>, %115, %cst_72 [0] : vector<8x1xf32> to vector<1xf32>
      %117 = vector.shape_cast %116 : vector<1xf32> to vector<1x1xf32>
      %c0_73 = arith.constant 0 : index
      %c0_74 = arith.constant 0 : index
      %c0_75 = arith.constant 0 : index
      %118 = vector.load %arg6[%c0_73, %c0_74, %c0_75] : memref<4x8x128xf32, #tpu.memory_space<vmem>>, vector<1x8x128xf32>
      %119 = vector.shape_cast %118 : vector<1x8x128xf32> to vector<8x128xf32>
      %cst_76 = arith.constant dense<0.000000e+00> : vector<8xf32>
      %120 = vector.multi_reduction <add>, %119, %cst_76 [1] : vector<8x128xf32> to vector<8xf32>
      %121 = vector.shape_cast %120 : vector<8xf32> to vector<8x1xf32>
      %cst_77 = arith.constant dense<0.000000e+00> : vector<1xf32>
      %122 = vector.multi_reduction <add>, %121, %cst_77 [0] : vector<8x1xf32> to vector<1xf32>
      %123 = vector.shape_cast %122 : vector<1xf32> to vector<1x1xf32>
      %cst_78 = arith.constant 9.99999971E-10 : f32
      %124 = vector.broadcast %cst_78 : f32 to vector<1x1xf32>
      %125 = arith.addf %117, %124 : vector<1x1xf32>
      %cst_79 = arith.constant 9.99999971E-10 : f32
      %126 = vector.broadcast %cst_79 : f32 to vector<1x1xf32>
      %127 = arith.addf %123, %126 : vector<1x1xf32>
      %128 = arith.divf %125, %127 : vector<1x1xf32>
      %c1_80 = arith.constant 1 : index
      %c0_81 = arith.constant 0 : index
      %c0_82 = arith.constant 0 : index
      %129 = vector.load %arg5[%c1_80, %c0_81, %c0_82] : memref<4x8x128xf32, #tpu.memory_space<vmem>>, vector<1x8x128xf32>
      %130 = vector.shape_cast %129 : vector<1x8x128xf32> to vector<8x128xf32>
      %cst_83 = arith.constant dense<0.000000e+00> : vector<8xf32>
      %131 = vector.multi_reduction <add>, %130, %cst_83 [1] : vector<8x128xf32> to vector<8xf32>
      %132 = vector.shape_cast %131 : vector<8xf32> to vector<8x1xf32>
      %cst_84 = arith.constant dense<0.000000e+00> : vector<1xf32>
      %133 = vector.multi_reduction <add>, %132, %cst_84 [0] : vector<8x1xf32> to vector<1xf32>
      %134 = vector.shape_cast %133 : vector<1xf32> to vector<1x1xf32>
      %c1_85 = arith.constant 1 : index
      %c0_86 = arith.constant 0 : index
      %c0_87 = arith.constant 0 : index
      %135 = vector.load %arg6[%c1_85, %c0_86, %c0_87] : memref<4x8x128xf32, #tpu.memory_space<vmem>>, vector<1x8x128xf32>
      %136 = vector.shape_cast %135 : vector<1x8x128xf32> to vector<8x128xf32>
      %cst_88 = arith.constant dense<0.000000e+00> : vector<8xf32>
      %137 = vector.multi_reduction <add>, %136, %cst_88 [1] : vector<8x128xf32> to vector<8xf32>
      %138 = vector.shape_cast %137 : vector<8xf32> to vector<8x1xf32>
      %cst_89 = arith.constant dense<0.000000e+00> : vector<1xf32>
      %139 = vector.multi_reduction <add>, %138, %cst_89 [0] : vector<8x1xf32> to vector<1xf32>
      %140 = vector.shape_cast %139 : vector<1xf32> to vector<1x1xf32>
      %cst_90 = arith.constant 9.99999971E-10 : f32
      %141 = vector.broadcast %cst_90 : f32 to vector<1x1xf32>
      %142 = arith.addf %134, %141 : vector<1x1xf32>
      %cst_91 = arith.constant 9.99999971E-10 : f32
      %143 = vector.broadcast %cst_91 : f32 to vector<1x1xf32>
      %144 = arith.addf %140, %143 : vector<1x1xf32>
      %145 = arith.divf %142, %144 : vector<1x1xf32>
      %c2_92 = arith.constant 2 : index
      %c0_93 = arith.constant 0 : index
      %c0_94 = arith.constant 0 : index
      %146 = vector.load %arg5[%c2_92, %c0_93, %c0_94] : memref<4x8x128xf32, #tpu.memory_space<vmem>>, vector<1x8x128xf32>
      %147 = vector.shape_cast %146 : vector<1x8x128xf32> to vector<8x128xf32>
      %cst_95 = arith.constant dense<0.000000e+00> : vector<8xf32>
      %148 = vector.multi_reduction <add>, %147, %cst_95 [1] : vector<8x128xf32> to vector<8xf32>
      %149 = vector.shape_cast %148 : vector<8xf32> to vector<8x1xf32>
      %cst_96 = arith.constant dense<0.000000e+00> : vector<1xf32>
      %150 = vector.multi_reduction <add>, %149, %cst_96 [0] : vector<8x1xf32> to vector<1xf32>
      %151 = vector.shape_cast %150 : vector<1xf32> to vector<1x1xf32>
      %c2_97 = arith.constant 2 : index
      %c0_98 = arith.constant 0 : index
      %c0_99 = arith.constant 0 : index
      %152 = vector.load %arg6[%c2_97, %c0_98, %c0_99] : memref<4x8x128xf32, #tpu.memory_space<vmem>>, vector<1x8x128xf32>
      %153 = vector.shape_cast %152 : vector<1x8x128xf32> to vector<8x128xf32>
      %cst_100 = arith.constant dense<0.000000e+00> : vector<8xf32>
      %154 = vector.multi_reduction <add>, %153, %cst_100 [1] : vector<8x128xf32> to vector<8xf32>
      %155 = vector.shape_cast %154 : vector<8xf32> to vector<8x1xf32>
      %cst_101 = arith.constant dense<0.000000e+00> : vector<1xf32>
      %156 = vector.multi_reduction <add>, %155, %cst_101 [0] : vector<8x1xf32> to vector<1xf32>
      %157 = vector.shape_cast %156 : vector<1xf32> to vector<1x1xf32>
      %cst_102 = arith.constant 9.99999971E-10 : f32
      %158 = vector.broadcast %cst_102 : f32 to vector<1x1xf32>
      %159 = arith.addf %151, %158 : vector<1x1xf32>
      %cst_103 = arith.constant 9.99999971E-10 : f32
      %160 = vector.broadcast %cst_103 : f32 to vector<1x1xf32>
      %161 = arith.addf %157, %160 : vector<1x1xf32>
      %162 = arith.divf %159, %161 : vector<1x1xf32>
      %c3_104 = arith.constant 3 : index
      %c0_105 = arith.constant 0 : index
      %c0_106 = arith.constant 0 : index
      %163 = vector.load %arg5[%c3_104, %c0_105, %c0_106] : memref<4x8x128xf32, #tpu.memory_space<vmem>>, vector<1x8x128xf32>
      %164 = vector.shape_cast %163 : vector<1x8x128xf32> to vector<8x128xf32>
      %cst_107 = arith.constant dense<0.000000e+00> : vector<8xf32>
      %165 = vector.multi_reduction <add>, %164, %cst_107 [1] : vector<8x128xf32> to vector<8xf32>
      %166 = vector.shape_cast %165 : vector<8xf32> to vector<8x1xf32>
      %cst_108 = arith.constant dense<0.000000e+00> : vector<1xf32>
      %167 = vector.multi_reduction <add>, %166, %cst_108 [0] : vector<8x1xf32> to vector<1xf32>
      %168 = vector.shape_cast %167 : vector<1xf32> to vector<1x1xf32>
      %c3_109 = arith.constant 3 : index
      %c0_110 = arith.constant 0 : index
      %c0_111 = arith.constant 0 : index
      %169 = vector.load %arg6[%c3_109, %c0_110, %c0_111] : memref<4x8x128xf32, #tpu.memory_space<vmem>>, vector<1x8x128xf32>
      %170 = vector.shape_cast %169 : vector<1x8x128xf32> to vector<8x128xf32>
      %cst_112 = arith.constant dense<0.000000e+00> : vector<8xf32>
      %171 = vector.multi_reduction <add>, %170, %cst_112 [1] : vector<8x128xf32> to vector<8xf32>
      %172 = vector.shape_cast %171 : vector<8xf32> to vector<8x1xf32>
      %cst_113 = arith.constant dense<0.000000e+00> : vector<1xf32>
      %173 = vector.multi_reduction <add>, %172, %cst_113 [0] : vector<8x1xf32> to vector<1xf32>
      %174 = vector.shape_cast %173 : vector<1xf32> to vector<1x1xf32>
      %cst_114 = arith.constant 9.99999971E-10 : f32
      %175 = vector.broadcast %cst_114 : f32 to vector<1x1xf32>
      %176 = arith.addf %168, %175 : vector<1x1xf32>
      %cst_115 = arith.constant 9.99999971E-10 : f32
      %177 = vector.broadcast %cst_115 : f32 to vector<1x1xf32>
      %178 = arith.addf %174, %177 : vector<1x1xf32>
      %179 = arith.divf %176, %178 : vector<1x1xf32>
      %180 = tpu.concatenate %128, %145, %162, %179 in 1 : vector<1x1xf32>, vector<1x1xf32>, vector<1x1xf32>, vector<1x1xf32> -> vector<1x4xf32>
      %c0_116 = arith.constant 0 : index
      %c0_117 = arith.constant 0 : index
      %c0_118 = arith.constant 0 : index
      %181 = vector.load %arg4[%c0_116, %c0_117, %c0_118] : memref<1x1x4xf32, #tpu.memory_space<vmem>>, vector<1x1x4xf32>
      %182 = vector.shape_cast %181 : vector<1x1x4xf32> to vector<1x4xf32>
      %183 = vector.shape_cast %180 : vector<1x4xf32> to vector<1x1x4xf32>
      tpu.vector_store %arg4[%c0_116, %c0_117, %c0_118], %183 {strides = array<i32>} : memref<1x1x4xf32, #tpu.memory_space<vmem>>, vector<1x1x4xf32>,
    } else {
    }
    return
  }
  func.func @transform_0(%arg0: i32, %arg1: i32) -> (i32, i32, i32, i32) {
    %c0_i32 = arith.constant 0 : i32
    %c0_i32_0 = arith.constant 0 : i32
    %c0_i32_1 = arith.constant 0 : i32
    return %arg0, %c0_i32, %arg1, %c0_i32_0 : i32, i32, i32, i32
  }
  func.func @transform_1(%arg0: i32, %arg1: i32) -> (i32, i32, i32, i32) {
    %c0_i32 = arith.constant 0 : i32
    %c0_i32_0 = arith.constant 0 : i32
    %c0_i32_1 = arith.constant 0 : i32
    return %arg0, %c0_i32, %arg1, %c0_i32_0 : i32, i32, i32, i32
  }
  func.func @transform_2(%arg0: i32, %arg1: i32) -> (i32, i32, i32) {
    %c0_i32 = arith.constant 0 : i32
    %c0_i32_0 = arith.constant 0 : i32
    %c0_i32_1 = arith.constant 0 : i32
    return %arg0, %c0_i32, %c0_i32_0 : i32, i32, i32
  }
}

</mosaic_0001>

<llo_original>
// kernel: tpu_custom_call.1
$region0: #{tpu_custom_call.1}
  #allocation0 [shape = 'u32[]', space=smem, size = 0x4, offset = 0x4, fixed_abs, tag = 'smem constant byte address 0x4 - core index']
  #allocation1 [shape = 'u32[72,128]{1,0:T(1,128)}', space=vmem, size = 0x9000, scoped, tag = 'internal scratch']
  #allocation2 [shape = 'f32[4,8,128]{2,1,0:T(8,128)}', space=vmem, size = 0x4000, scoped, tag = 'scratch operand']
  #allocation3 [shape = 'f32[4,8,128]{2,1,0:T(8,128)}', space=vmem, size = 0x4000, scoped, tag = 'scratch operand']
  %s0 = inlined_call_operand.hbm [shape: f32[2,4,8,128], index: 0, kind: input, shape index: {}]
  %s1 = inlined_call_operand.hbm [shape: s32[2,1,8,128], index: 1, kind: input, shape index: {}]
  %s2 = inlined_call_operand.hbm [shape: f32[2,1,4], index: 2, kind: output, shape index: {}]
  %s3 = sld [smem:[#allocation0]]
  $region57: #{tpu_custom_call.1} parent=0
    _
  %s5 = ssub.s32 1, %s3
  %s6 = scalar_select 0, %s5, %s3
  $region1: #{tpu_custom_call.1} parent=0
    #allocation4 [shape = 'u8[32768]{0}', space=vmem, size = 0x8000, scoped, tag = 'input window, operand 0']
    #allocation5 [shape = 's32[2]{0}', space=sflag, size = 0x8, scoped, tag = 'scoped memory for tpu_custom_call.1']
    #allocation6 [shape = 's32[2]{0}', space=sflag, size = 0x8, scoped, tag = 'scoped memory for tpu_custom_call.1']
    #allocation7 [shape = 'u8[8192]{0}', space=vmem, size = 0x2000, scoped, tag = 'input window, operand 1']
    #allocation8 [shape = 's32[2]{0}', space=sflag, size = 0x8, scoped, tag = 'scoped memory for tpu_custom_call.1']
    #allocation9 [shape = 'u8[1024]{0}', space=vmem, size = 0x400, scoped, tag = 'output window, operand 0']
    %7 = vsyncpa [#allocation5], 0
    %s8 = scalar_lea.sflag [#allocation5], 1
    %9 = vsyncpa %s8, 0
    %10 = vsyncpa [#allocation8], 0
    %s11 = scalar_lea.sflag [#allocation8], 1
    %12 = vsyncpa %s11, 0
    %13 = vsyncpa [#allocation6], 0
    %s14 = scalar_lea.sflag [#allocation6], 1
    %15 = vsyncpa %s14, 0
    loop: start=0, step=1, limit=4
    $region2: #{tpu_custom_call.1} parent=1 // loop_pre_header
      _
    $region3: #{tpu_custom_call.1} parent=1 // loop_header
      %s17 = sphi 0, %s21
      %p18 = scmp.ge.s32.totalorder %s17, 4
      %s24 = sphi 0, %s36
      %s25 = sphi 0, %s32
      %s26 = sphi 0, %s24
      %s27 = sphi 0, %s25
      %s28 = sphi 0, %s26
      %s29 = sphi 0, %s27
      %s41 = sphi 0, %s43
      %s44 = sphi 0, %s41
      %s45 = sphi 0, %s44
      %s61 = sphi 0, %s45
      %s69 = sphi 0, %s71
      %s72 = sphi 0, %s69
      %s73 = sphi 0, %s72
      %s89 = sphi 0, %s73
      %s95 = sphi 0, %s97
      %s98 = sphi 0, %s95
      %s99 = sphi 0, %s98
      %s115 = sphi 0, %s99
    $region4: #{tpu_custom_call.1} parent=1 // loop_header_branch
      %20 = sbr.rel (%p18) target = $region8
    $region5: #{tpu_custom_call.1} parent=1 // loop_body
      %s22 = ssub.s32 %s17, 1
      %s23 = ssub.s32 %s17, 2
      %s30 = sadd.s32 1, %s25
      %p31 = scmp.ge.s32.totalorder %s30, 1
      %s32 = scalar_select %p31, 0, %s30
      %s33 = sadd.s32 1, %s24
      %s34 = scalar_select %p31, %s33, %s24
      %p35 = scmp.ge.s32.totalorder %s34, 2
      %s36 = scalar_select %p35, 0, %s34
      %s37 = ssub.s32 %s24, %s36
      %s38 = ssub.s32 %s25, %s32
      %s39 = sor.u32 %s37, %s38
      %p40 = scmp.eq.s32.totalorder %s39, 0
      %s42 = sadd.s32 %s41, 1
      %s43 = scalar_select %p40, %s41, %s42
      %p46 = pneg %p40
      %p47 = scmp.eq.s32.totalorder %s17, 1
      %p48 = por %p46, %p47
      %p49 = scmp.ne.s32.totalorder %s41, %s44
      %p50 = scmp.eq.s32.totalorder %s17, 0
      %p51 = por %p49, %p50
      %p52 = scmp.ne.s32.totalorder %s41, %s44
      %p53 = scmp.eq.s32.totalorder %s22, 1
      %p54 = por %p52, %p53
      %p55 = scmp.ne.s32.totalorder %s44, %s45
      %p56 = scmp.eq.s32.totalorder %s22, 0
      %p57 = por %p55, %p56
      %p58 = scmp.ne.s32.totalorder %s44, %s45
      %p59 = scmp.eq.s32.totalorder %s23, 1
      %p60 = por %p58, %p59
      %p62 = scmp.ne.s32.totalorder %s45, %s61
      %p63 = scmp.eq.s32.totalorder %s23, 0
      %p64 = por %p62, %p63
      %s65 = ssub.s32 %s24, %s36
      %s66 = ssub.s32 %s25, %s32
      %s67 = sor.u32 %s65, %s66
      %p68 = scmp.eq.s32.totalorder %s67, 0
      %s70 = sadd.s32 %s69, 1
      %s71 = scalar_select %p68, %s69, %s70
      %p74 = pneg %p68
      %p75 = scmp.eq.s32.totalorder %s17, 1
      %p76 = por %p74, %p75
      %p77 = scmp.ne.s32.totalorder %s69, %s72
      %p78 = scmp.eq.s32.totalorder %s17, 0
      %p79 = por %p77, %p78
      %p80 = scmp.ne.s32.totalorder %s69, %s72
      %p81 = scmp.eq.s32.totalorder %s22, 1
      %p82 = por %p80, %p81
      %p83 = scmp.ne.s32.totalorder %s72, %s73
      %p84 = scmp.eq.s32.totalorder %s22, 0
      %p85 = por %p83, %p84
      %p86 = scmp.ne.s32.totalorder %s72, %s73
      %p87 = scmp.eq.s32.totalorder %s23, 1
      %p88 = por %p86, %p87
      %p90 = scmp.ne.s32.totalorder %s73, %s89
      %p91 = scmp.eq.s32.totalorder %s23, 0
      %p92 = por %p90, %p91
      %s93 = ssub.s32 %s24, %s36
      %p94 = scmp.eq.s32.totalorder %s93, 0
      %s96 = sadd.s32 %s95, 1
      %s97 = scalar_select %p94, %s95, %s96
      %p100 = pneg %p94
      %p101 = scmp.eq.s32.totalorder %s17, 1
      %p102 = por %p100, %p101
      %p103 = scmp.ne.s32.totalorder %s95, %s98
      %p104 = scmp.eq.s32.totalorder %s17, 0
      %p105 = por %p103, %p104
      %p106 = scmp.ne.s32.totalorder %s95, %s98
      %p107 = scmp.eq.s32.totalorder %s22, 1
      %p108 = por %p106, %p107
      %p109 = scmp.ne.s32.totalorder %s98, %s99
      %p110 = scmp.eq.s32.totalorder %s22, 0
      %p111 = por %p109, %p110
      %p112 = scmp.ne.s32.totalorder %s98, %s99
      %p113 = scmp.eq.s32.totalorder %s23, 1
      %p114 = por %p112, %p113
      %p116 = scmp.ne.s32.totalorder %s99, %s115
      %p117 = scmp.eq.s32.totalorder %s23, 0
      %p118 = por %p116, %p117
      %p119 = scmp.le.s32.totalorder 1, %s17
      %p120 = scmp.lt.s32.totalorder %s17, 3
      %p121 = pnand %p119, %p120
      %p122 = pneg %p121
      // Predicated region
      $region9: #{tpu_custom_call.1} parent=5 // pred_check
        _
      $region10: #{tpu_custom_call.1} parent=5 // pred_check_branch
        %124 = sbr.rel (%p121) target = $region12
      $region11: #{tpu_custom_call.1} parent=5 // pred_region
        %s125 = ssub.s32 %s17, 1
      $region12: #{tpu_custom_call.1} parent=5 // pred_fallthru
        _
      %p126 = scmp.lt.s32.totalorder %s17, 2
      // Predicated region
      $region13: #{tpu_custom_call.1} parent=5 // pred_check
        %p127 = pneg %p126
      $region14: #{tpu_custom_call.1} parent=5 // pred_check_branch
        %129 = sbr.rel (%p127) target = $region16
      $region15: #{tpu_custom_call.1} parent=5 // pred_region
        // Predicated region
        $region17: #{tpu_custom_call.1} parent=15 // pred_check
          %p130 = pneg %p51
        $region18: #{tpu_custom_call.1} parent=15 // pred_check_branch
          %132 = sbr.rel (%p130) target = $region20
        $region19: #{tpu_custom_call.1} parent=15 // pred_region
          %s133 = sand.u32 %s41, 1
          %s134 = scalar_lea.sflag [#allocation5], %s133
          %s135 = sand.u32 %s41, 1
          %s136 = smul.addr %s135, 32
          %s137 = scalar_lea.vmem [#allocation4], %s136
          %139 = vsyncadd %s134, 0
          %s140 = smul.addr %s24, 4
          %s141 = sadd.s32 %s25, %s140
          %s142 = smul.addr %s141, 8
          %s143 = scalar_lea.hbm %s0, %s142
          %s144 = sshll.u32 %s143, 4
          %s145 = int_to_ptr.hbm [resolvable:$true] %s144
          %s146 = sshll.u32 %s137, 4
          %s147 = int_to_ptr.vmem [resolvable:$true] %s146
          %152 = dma.hbm_to_vmem [thread:$0]  %s145, 512, %s147, %s134, 128, 128, 8
        $region20: #{tpu_custom_call.1} parent=15 // pred_fallthru
          _
        // Predicated region
        $region21: #{tpu_custom_call.1} parent=15 // pred_check
          %p153 = pneg %p79
        $region22: #{tpu_custom_call.1} parent=15 // pred_check_branch
          %155 = sbr.rel (%p153) target = $region24
        $region23: #{tpu_custom_call.1} parent=15 // pred_region
          %s156 = sand.u32 %s69, 1
          %s157 = scalar_lea.sflag [#allocation8], %s156
          %s158 = sand.u32 %s69, 1
          %s159 = smul.addr %s158, 8
          %s160 = scalar_lea.vmem [#allocation7], %s159
          %162 = vsyncadd %s157, 0
          %s163 = sadd.s32 %s25, %s24
          %s164 = smul.addr %s163, 8
          %s165 = scalar_lea.hbm %s1, %s164
          %s167 = sshll.u32 %s165, 4
          %s168 = int_to_ptr.hbm [resolvable:$true] %s167
          %s169 = sshll.u32 %s160, 4
          %s170 = int_to_ptr.vmem [resolvable:$true] %s169
          %172 = dma.hbm_to_vmem [thread:$0]  %s168, 128, %s170, %s157
        $region24: #{tpu_custom_call.1} parent=15 // pred_fallthru
          _
      $region16: #{tpu_custom_call.1} parent=5 // pred_fallthru
        _
      %p173 = scmp.le.s32.totalorder 1, %s17
      %p174 = scmp.lt.s32.totalorder %s17, 3
      %p175 = pnand %p173, %p174
      %p176 = pneg %p175
      // Predicated region
      $region25: #{tpu_custom_call.1} parent=5 // pred_check
        _
      $region26: #{tpu_custom_call.1} parent=5 // pred_check_branch
        %178 = sbr.rel (%p175) target = $region28
      $region27: #{tpu_custom_call.1} parent=5 // pred_region
        %s179 = ssub.s32 %s17, 1
        %s180 = sand.u32 %s44, 1
        %s181 = scalar_lea.sflag [#allocation5], %s180
        %s182 = sand.u32 %s44, 1
        %s183 = smul.addr %s182, 32
        %s184 = scalar_lea.vmem [#allocation4], %s183
        // Predicated region
        $region29: #{tpu_custom_call.1} parent=27 // pred_check
          %p185 = pneg %p57
        $region30: #{tpu_custom_call.1} parent=27 // pred_check_branch
          %187 = sbr.rel (%p185) target = $region32
        $region31: #{tpu_custom_call.1} parent=27 // pred_region
          %189 = dma.done %s181, 512
        $region32: #{tpu_custom_call.1} parent=27 // pred_fallthru
          _
        %s190 = sand.u32 %s72, 1
        %s191 = scalar_lea.sflag [#allocation8], %s190
        %s192 = sand.u32 %s72, 1
        %s193 = smul.addr %s192, 8
        %s194 = scalar_lea.vmem [#allocation7], %s193
        // Predicated region
        $region33: #{tpu_custom_call.1} parent=27 // pred_check
          %p195 = pneg %p85
        $region34: #{tpu_custom_call.1} parent=27 // pred_check_branch
          %197 = sbr.rel (%p195) target = $region36
        $region35: #{tpu_custom_call.1} parent=27 // pred_region
          %199 = dma.done %s191, 128
        $region36: #{tpu_custom_call.1} parent=27 // pred_fallthru
          _
        %s200 = sand.u32 %s44, 1
        %s201 = scalar_lea.sflag [#allocation5], %s200
        %s202 = sand.u32 %s44, 1
        %s203 = smul.addr %s202, 32
        %s204 = scalar_lea.vmem [#allocation4], %s203
        %p205 = pneg %p57
        %p206 = pneg %p54
        %s207 = sand.u32 %s72, 1
        %s208 = scalar_lea.sflag [#allocation8], %s207
        %s209 = sand.u32 %s72, 1
        %s210 = smul.addr %s209, 8
        %s211 = scalar_lea.vmem [#allocation7], %s210
        %p212 = pneg %p85
        %p213 = pneg %p82
        %p214 = pneg %p111
        %p215 = pneg %p108
        %s216 = sand.u32 %s98, 1
        %s217 = scalar_lea.sflag [#allocation6], %s216
        %s218 = sand.u32 %s98, 1
        %s219 = scalar_lea.vmem [#allocation9], %s218
        %p220 = scmp.eq.s32.totalorder %s27, 0
        // Predicated region
        $region37: #{tpu_custom_call.1} parent=27 // pred_check
          %p221 = pneg %p220
        $region38: #{tpu_custom_call.1} parent=27 // pred_check_branch
          %223 = sbr.rel (%p221) target = $region40
        $region39: #{tpu_custom_call.1} parent=27 // pred_region
          %224 = vst [vmem:[#allocation2] sm:$0xff] 0.0
          %225 = vst [vmem:[#allocation2 + $0x8] sm:$0xff] 0.0
          %226 = vst [vmem:[#allocation2 + $0x10] sm:$0xff] 0.0
          %227 = vst [vmem:[#allocation2 + $0x18] sm:$0xff] 0.0
          %228 = vst [vmem:[#allocation3] sm:$0xff] 0.0
          %229 = vst [vmem:[#allocation3 + $0x8] sm:$0xff] 0.0
          %230 = vst [vmem:[#allocation3 + $0x10] sm:$0xff] 0.0
          %231 = vst [vmem:[#allocation3 + $0x18] sm:$0xff] 0.0
        $region40: #{tpu_custom_call.1} parent=27 // pred_fallthru
          _
        %v232 = vld [vmem:[%s194] sm:$0xff]
        %v233 = vld [vmem:[%s184] sm:$0xff]
        %s234 = sadd.s32 0, 8
        %s235 = scalar_lea.vmem %s184, %s234 [#allocation4]
        %v236 = vld [vmem:[%s235] sm:$0xff]
        %vm237 = vcmp.gt.f32.partialorder %v236, %v233
        %v238 = vsel %vm237, 1, 0
        %v239 = vsel %vm237, %v236, %v233
        %s240 = sadd.s32 0, 16
        %s241 = scalar_lea.vmem %s184, %s240 [#allocation4]
        %v242 = vld [vmem:[%s241] sm:$0xff]
        %vm243 = vcmp.gt.f32.partialorder %v242, %v239
        %v244 = vsel %vm243, 2, %v238
        %v245 = vsel %vm243, %v242, %v239
        %s246 = sadd.s32 0, 24
        %s247 = scalar_lea.vmem %s184, %s246 [#allocation4]
        %v248 = vld [vmem:[%s247] sm:$0xff]
        %vm249 = vcmp.gt.f32.partialorder %v248, %v245
        %v250 = vsel %vm249, 3, %v244
        %vm251 = vcmp.eq.s32.totalorder %v250, %v232
        %vm252 = vcmp.eq.s32.totalorder %v232, 0
        %v253 = vld [vmem:[#allocation2] sm:$0xff]
        %vm254 = vmand %vm252, %vm251
        %v255 = vsel %vm254, 1, 0
        %v256 = vcvt.s32.f32 %v255
        %v257 = vadd.f32 %v253, %v256
        %258 = vst [vmem:[#allocation2] sm:$0xff] %v257
        %v259 = vld [vmem:[#allocation3] sm:$0xff]
        %v260 = vsel %vm252, 1, 0
        %v261 = vcvt.s32.f32 %v260
        %v262 = vadd.f32 %v259, %v261
        %263 = vst [vmem:[#allocation3] sm:$0xff] %v262
        %vm264 = vcmp.eq.s32.totalorder %v232, 1
        %s265 = scalar_lea.vmem [#allocation2], 8
        %v266 = vld [vmem:[%s265] sm:$0xff]
        %vm267 = vmand %vm264, %vm251
        %v268 = vsel %vm267, 1, 0
        %v269 = vcvt.s32.f32 %v268
        %v270 = vadd.f32 %v266, %v269
        %271 = vst [vmem:[%s265] sm:$0xff] %v270
        %s272 = scalar_lea.vmem [#allocation3], 8
        %v273 = vld [vmem:[%s272] sm:$0xff]
        %v274 = vsel %vm264, 1, 0
        %v275 = vcvt.s32.f32 %v274
        %v276 = vadd.f32 %v273, %v275
        %277 = vst [vmem:[%s272] sm:$0xff] %v276
        %vm278 = vcmp.eq.s32.totalorder %v232, 2
        %s279 = scalar_lea.vmem [#allocation2], 16
        %v280 = vld [vmem:[%s279] sm:$0xff]
        %vm281 = vmand %vm278, %vm251
        %v282 = vsel %vm281, 1, 0
        %v283 = vcvt.s32.f32 %v282
        %v284 = vadd.f32 %v280, %v283
        %285 = vst [vmem:[%s279] sm:$0xff] %v284
        %s286 = scalar_lea.vmem [#allocation3], 16
        %v287 = vld [vmem:[%s286] sm:$0xff]
        %v288 = vsel %vm278, 1, 0
        %v289 = vcvt.s32.f32 %v288
        %v290 = vadd.f32 %v287, %v289
        %291 = vst [vmem:[%s286] sm:$0xff] %v290
        %vm292 = vcmp.eq.s32.totalorder %v232, 3
        %s293 = scalar_lea.vmem [#allocation2], 24
        %v294 = vld [vmem:[%s293] sm:$0xff]
        %vm295 = vmand %vm292, %vm251
        %v296 = vsel %vm295, 1, 0
        %v297 = vcvt.s32.f32 %v296
        %v298 = vadd.f32 %v294, %v297
        %299 = vst [vmem:[%s293] sm:$0xff] %v298
        %s300 = scalar_lea.vmem [#allocation3], 24
        %v301 = vld [vmem:[%s300] sm:$0xff]
        %v302 = vsel %vm292, 1, 0
        %v303 = vcvt.s32.f32 %v302
        %v304 = vadd.f32 %v301, %v303
        %305 = vst [vmem:[%s300] sm:$0xff] %v304
        // Predicated region
        $region41: #{tpu_custom_call.1} parent=27 // pred_check
          %p306 = pneg %p220
        $region42: #{tpu_custom_call.1} parent=27 // pred_check_branch
          %308 = sbr.rel (%p306) target = $region44
        $region43: #{tpu_custom_call.1} parent=27 // pred_region
          %v309 = vld [vmem:[#allocation2] sm:$0xff]
          %310 = vadd.xlane.f32.xlu0 %v309
          %v311 = vpop.xlane.xlu0 %310
          %v312 = vrot.slane %v311, 4
          %v313 = vadd.f32 %v311, %v312
          %v314 = vrot.slane %v313, 2
          %v315 = vadd.f32 %v313, %v314
          %v316 = vrot.slane %v315, 1
          %v317 = vadd.f32 %v315, %v316
          %v318 = vld [vmem:[#allocation3] sm:$0xff]
          %319 = vadd.xlane.f32.xlu0 %v318
          %v320 = vpop.xlane.xlu0 %319
          %v321 = vrot.slane %v320, 4
          %v322 = vadd.f32 %v320, %v321
          %v323 = vrot.slane %v322, 2
          %v324 = vadd.f32 %v322, %v323
          %v325 = vrot.slane %v324, 1
          %v326 = vadd.f32 %v324, %v325
          %v327 = vadd.f32 %v317, 1e-09
          %v328 = vadd.f32 %v326, 1e-09
          %v329 = vrcp.pop %v328
          %v330 = vmul.f32 %v328, %v329
          %v331 = vsub.f32 1.0, %v330
          %v332 = vmul.f32 %v329, %v331
          %v333 = vadd.f32 %v329, %v332
          %vm334 = vweird.f32 %v328
          %vm335 = vweird.f32 %v329
          %vm336 = vmor %vm334, %vm335
          %v337 = vsel %vm336, %v329, %v333
          %v338 = vand.u32 2147483647, %v328
          %vm339 = vcmp.eq.f32.partialorder %v338, 8.507059e+37
          %v340 = vand.u32 %v328, 2147483648
          %v341 = vor.u32 1.1754944e-38, %v340
          %v342 = vsel %vm339, %v341, %v337
          %v343 = vmul.f32 %v327, %v342
          %v344 = vld [vmem:[%s265] sm:$0xff]
          %345 = vadd.xlane.f32.xlu0 %v344
          %v346 = vpop.xlane.xlu0 %345
          %v347 = vrot.slane %v346, 4
          %v348 = vadd.f32 %v346, %v347
          %v349 = vrot.slane %v348, 2
          %v350 = vadd.f32 %v348, %v349
          %v351 = vrot.slane %v350, 1
          %v352 = vadd.f32 %v350, %v351
          %v353 = vld [vmem:[%s272] sm:$0xff]
          %354 = vadd.xlane.f32.xlu0 %v353
          %v355 = vpop.xlane.xlu0 %354
          %v356 = vrot.slane %v355, 4
          %v357 = vadd.f32 %v355, %v356
          %v358 = vrot.slane %v357, 2
          %v359 = vadd.f32 %v357, %v358
          %v360 = vrot.slane %v359, 1
          %v361 = vadd.f32 %v359, %v360
          %v362 = vadd.f32 %v352, 1e-09
          %v363 = vadd.f32 %v361, 1e-09
          %v364 = vrcp.pop %v363
          %v365 = vmul.f32 %v363, %v364
          %v366 = vsub.f32 1.0, %v365
          %v367 = vmul.f32 %v364, %v366
          %v368 = vadd.f32 %v364, %v367
          %vm369 = vweird.f32 %v363
          %vm370 = vweird.f32 %v364
          %vm371 = vmor %vm369, %vm370
          %v372 = vsel %vm371, %v364, %v368
          %v373 = vand.u32 2147483647, %v363
          %vm374 = vcmp.eq.f32.partialorder %v373, 8.507059e+37
          %v375 = vand.u32 %v363, 2147483648
          %v376 = vor.u32 1.1754944e-38, %v375
          %v377 = vsel %vm374, %v376, %v372
          %v378 = vmul.f32 %v362, %v377
          %v379 = vld [vmem:[%s279] sm:$0xff]
          %380 = vadd.xlane.f32.xlu0 %v379
          %v381 = vpop.xlane.xlu0 %380
          %v382 = vrot.slane %v381, 4
          %v383 = vadd.f32 %v381, %v382
          %v384 = vrot.slane %v383, 2
          %v385 = vadd.f32 %v383, %v384
          %v386 = vrot.slane %v385, 1
          %v387 = vadd.f32 %v385, %v386
          %v388 = vld [vmem:[%s286] sm:$0xff]
          %389 = vadd.xlane.f32.xlu0 %v388
          %v390 = vpop.xlane.xlu0 %389
          %v391 = vrot.slane %v390, 4
          %v392 = vadd.f32 %v390, %v391
          %v393 = vrot.slane %v392, 2
          %v394 = vadd.f32 %v392, %v393
          %v395 = vrot.slane %v394, 1
          %v396 = vadd.f32 %v394, %v395
          %v397 = vadd.f32 %v387, 1e-09
          %v398 = vadd.f32 %v396, 1e-09
          %v399 = vrcp.pop %v398
          %v400 = vmul.f32 %v398, %v399
          %v401 = vsub.f32 1.0, %v400
          %v402 = vmul.f32 %v399, %v401
          %v403 = vadd.f32 %v399, %v402
          %vm404 = vweird.f32 %v398
          %vm405 = vweird.f32 %v399
          %vm406 = vmor %vm404, %vm405
          %v407 = vsel %vm406, %v399, %v403
          %v408 = vand.u32 2147483647, %v398
          %vm409 = vcmp.eq.f32.partialorder %v408, 8.507059e+37
          %v410 = vand.u32 %v398, 2147483648
          %v411 = vor.u32 1.1754944e-38, %v410
          %v412 = vsel %vm409, %v411, %v407
          %v413 = vmul.f32 %v397, %v412
          %v414 = vld [vmem:[%s293] sm:$0xff]
          %415 = vadd.xlane.f32.xlu0 %v414
          %v416 = vpop.xlane.xlu0 %415
          %v417 = vrot.slane %v416, 4
          %v418 = vadd.f32 %v416, %v417
          %v419 = vrot.slane %v418, 2
          %v420 = vadd.f32 %v418, %v419
          %v421 = vrot.slane %v420, 1
          %v422 = vadd.f32 %v420, %v421
          %v423 = vld [vmem:[%s300] sm:$0xff]
          %424 = vadd.xlane.f32.xlu0 %v423
          %v425 = vpop.xlane.xlu0 %424
          %v426 = vrot.slane %v425, 4
          %v427 = vadd.f32 %v425, %v426
          %v428 = vrot.slane %v427, 2
          %v429 = vadd.f32 %v427, %v428
          %v430 = vrot.slane %v429, 1
          %v431 = vadd.f32 %v429, %v430
          %v432 = vadd.f32 %v422, 1e-09
          %v433 = vadd.f32 %v431, 1e-09
          %v434 = vrcp.pop %v433
          %v435 = vmul.f32 %v433, %v434
          %v436 = vsub.f32 1.0, %v435
          %v437 = vmul.f32 %v434, %v436
          %v438 = vadd.f32 %v434, %v437
          %vm439 = vweird.f32 %v433
          %vm440 = vweird.f32 %v434
          %vm441 = vmor %vm439, %vm440
          %v442 = vsel %vm441, %v434, %v438
          %v443 = vand.u32 2147483647, %v433
          %vm444 = vcmp.eq.f32.partialorder %v443, 8.507059e+37
          %v445 = vand.u32 %v433, 2147483648
          %v446 = vor.u32 1.1754944e-38, %v445
          %v447 = vsel %vm444, %v446, %v442
          %v448 = vmul.f32 %v432, %v447
          %vm449 = vcmask 7168
          %v450 = vsel %vm449, %v343, %v378
          %vm451 = vcmask 15360
          %v452 = vsel %vm451, %v450, %v413
          %vm453 = vcmask 23552
          %v454 = vsel %vm453, %v452, %v448
          %vm455 = vcmask 24576
          %456 = vst.msk [vmem:[%s219] sm:$0x1] %vm455, %v454
        $region44: #{tpu_custom_call.1} parent=27 // pred_fallthru
          _
        %s457 = sand.u32 %s98, 1
        %s458 = scalar_lea.sflag [#allocation6], %s457
        %s459 = sand.u32 %s98, 1
        %s460 = scalar_lea.vmem [#allocation9], %s459
        // Predicated region
        $region45: #{tpu_custom_call.1} parent=27 // pred_check
          %p461 = pneg %p108
        $region46: #{tpu_custom_call.1} parent=27 // pred_check_branch
          %463 = sbr.rel (%p461) target = $region48
        $region47: #{tpu_custom_call.1} parent=27 // pred_region
          %465 = vsyncadd %s458, 0
          %s466 = scalar_lea.hbm %s2, %s26
          %s468 = sshll.u32 %s460, 4
          %s469 = int_to_ptr.vmem [resolvable:$true] %s468
          %s470 = sshll.u32 %s466, 4
          %s471 = int_to_ptr.hbm [resolvable:$true] %s470
          %473 = dma.vmem_to_hbm [thread:$0]  %s469, 16, %s471, %s458
        $region48: #{tpu_custom_call.1} parent=27 // pred_fallthru
          _
      $region28: #{tpu_custom_call.1} parent=5 // pred_fallthru
        _
      %p474 = scmp.le.s32.totalorder 2, %s17
      // Predicated region
      $region49: #{tpu_custom_call.1} parent=5 // pred_check
        %p475 = pneg %p474
      $region50: #{tpu_custom_call.1} parent=5 // pred_check_branch
        %477 = sbr.rel (%p475) target = $region52
      $region51: #{tpu_custom_call.1} parent=5 // pred_region
        %s478 = ssub.s32 %s17, 2
        // Predicated region
        $region53: #{tpu_custom_call.1} parent=51 // pred_check
          %p479 = pneg %p114
        $region54: #{tpu_custom_call.1} parent=51 // pred_check_branch
          %481 = sbr.rel (%p479) target = $region56
        $region55: #{tpu_custom_call.1} parent=51 // pred_region
          %s482 = sand.u32 %s99, 1
          %s483 = scalar_lea.sflag [#allocation6], %s482
          %s484 = sand.u32 %s99, 1
          %s485 = scalar_lea.vmem [#allocation9], %s484
          %487 = dma.done %s483, 16
        $region56: #{tpu_custom_call.1} parent=51 // pred_fallthru
          _
      $region52: #{tpu_custom_call.1} parent=5 // pred_fallthru
        _
    $region6: #{tpu_custom_call.1} parent=1 // loop_footer
      %s21 = sadd.s32 1, %s17
    $region7: #{tpu_custom_call.1} parent=1 // loop_footer_branch
      %16 = sbr.rel target = $region3
    $region8: #{tpu_custom_call.1} parent=1 // loop_exit
      _
    %488 = vsyncpa [#allocation5], 1
    %s489 = scalar_lea.sflag [#allocation5], 1
    %490 = vsyncpa %s489, 1
    %491 = vsyncpa [#allocation8], 1
    %s492 = scalar_lea.sflag [#allocation8], 1
    %493 = vsyncpa %s492, 1
    %494 = vsyncpa [#allocation6], 1
    %s495 = scalar_lea.sflag [#allocation6], 1
    %496 = vsyncpa %s495, 1

</llo_original>
